<compile_context>
chip_gen: v6e
topology: v6e:2x2x1
jax: 0.10.0
libtpu: 0.0.40
codegen_flags: <defaults>
</compile_context>

<pallas_src>
import jax
import jax.numpy as jnp
from jax.experimental import pallas as pl
from jax.experimental.pallas import tpu as pltpu

MXU_DTYPE = jnp.bfloat16   # matmul operand dtype (set to jnp.float32 for a validation path)
FPN_DTYPE = MXU_DTYPE      # dtype of the intermediate (W-padded) fpn maps in HBM
PAD = 8                    # left zero border of the W-padded fpn maps (sublane aligned)


def _round_up(x, m):
    return (x + m - 1) // m * m


def _vmem_limit_bytes():
    """Per-generation VMEM limit: ~3/4 of physical VMEM (96 MiB on v5e/v6e, 48 MiB on v7x)."""
    phys = None
    try:
        phys = int(pltpu.get_tpu_info().vmem_capacity_bytes)
    except Exception:
        phys = None
    if not phys:
        try:
            kind = jax.devices()[0].device_kind.lower()
        except Exception:
            kind = ""
        phys = 64 * 1024 * 1024 if "v7" in kind else 128 * 1024 * 1024
    return min((phys * 3) // 4, 100 * 1024 * 1024)


def _compiler_params(vmem_limit):
    return pltpu.CompilerParams(
        dimension_semantics=("parallel", "parallel"),
        vmem_limit_bytes=int(vmem_limit),
    )


def _pick_tile_h(h, per_row_bytes, const_bytes, vmem_limit, n_batch, even=False, min_steps=8):
    """Budget-driven tile height: largest (even) divisor of h whose double-buffered
    working set fits in ~half the VMEM limit, capped so the (N, nT) grid keeps
    enough steps for pipelining / megacore sharding."""
    budget = max(vmem_limit // 2 - const_bytes, per_row_bytes)
    cap = max(1, budget // max(per_row_bytes, 1))
    cap = min(cap, max(8, (h * n_batch) // min_steps), h)
    best = None
    for t in range(1, cap + 1):
        if h % t == 0 and (not even or t % 2 == 0):
            best = t
    if best is None:
        best = 2 if (even and h % 2 == 0) else 1
    # TODO(synk): prime/odd H falls back to small divisors; a pl.cdiv grid with
    # per-row masking of the ragged last tile would remove this perf cliff.
    return best


# ----------------------------------------------------------------------------
# K0: 1x1 lateral conv (coarsest level) -> W-padded bf16 fpn map
# ----------------------------------------------------------------------------
def _lateral_pad_kernel(x_ref, w_ref, b_ref, o_ref):
    # x: (1, TH, W, Cin) f32   w: (Cin, Cp) MXU dtype   b: (1, Cp) f32
    # o: (1, TH, Wp, Cp) FPN_DTYPE  (interior at columns [PAD, PAD+W))
    _, TH, W, Cin = x_ref.shape
    Cp = w_ref.shape[1]
    Wp = o_ref.shape[2]
    x = x_ref[0].reshape(TH * W, Cin).astype(w_ref.dtype)
    lat = jnp.dot(x, w_ref[...], preferred_element_type=jnp.float32) + b_ref[...]
    o_ref[0, :, PAD:PAD + W, :] = lat.reshape(TH, W, Cp).astype(o_ref.dtype)
    # zero the border columns actually read by the 3x3 conv (cols PAD-1 and PAD+W)
    o_ref[0, :, 0:PAD, :] = jnp.zeros((TH, PAD, Cp), o_ref.dtype)
    o_ref[0, :, PAD + W:Wp, :] = jnp.zeros((TH, Wp - PAD - W, Cp), o_ref.dtype)


def lateral_pad(x, w, b, vmem_limit):
    # x: (N, H, W, Cin) NHWC f32 ; w: (Cin, Cp) ; b: (1, Cp)
    N, H, W, Cin = x.shape
    Cp = w.shape[1]
    Wp = _round_up(PAD + W + 1, 8)
    per_row = 2 * W * Cin * x.dtype.itemsize + 2 * Wp * Cp * jnp.dtype(FPN_DTYPE).itemsize
    const = 2 * (Cin * Cp * 2 + Cp * 4)
    TH = _pick_tile_h(H, per_row, const, vmem_limit, N)
    nT = H // TH
    return pl.pallas_call(
        _lateral_pad_kernel,
        out_shape=jax.ShapeDtypeStruct((N, H, Wp, Cp), FPN_DTYPE),
        grid_spec=pltpu.PrefetchScalarGridSpec(
            num_scalar_prefetch=0,
            grid=(N, nT),
            in_specs=[
                pl.BlockSpec((1, TH, W, Cin), lambda n, i: (n, i, 0, 0)),
                pl.BlockSpec((Cin, Cp), lambda n, i: (0, 0)),
                pl.BlockSpec((1, Cp), lambda n, i: (0, 0)),
            ],
            out_specs=pl.BlockSpec((1, TH, Wp, Cp), lambda n, i: (n, i, 0, 0)),
        ),
        compiler_params=_compiler_params(vmem_limit),
    )(x, w, b)


# ----------------------------------------------------------------------------
# K1: fused 1x1 lateral conv + nearest-2x upsample-add -> W-padded bf16 fpn map
# ----------------------------------------------------------------------------
def _lateral_topdown_pad_kernel(x_ref, w_ref, b_ref, c_ref, o_ref):
    # x: (1, TH, W, Cin) f32           w: (Cin, Cp)        b: (1, Cp) f32
    # c: (1, TH//2, Wcp, Cp) FPN_DTYPE (W-padded coarse fpn tile)
    # o: (1, TH, Wp, Cp) FPN_DTYPE
    _, TH, W, Cin = x_ref.shape
    Cp = w_ref.shape[1]
    Wp = o_ref.shape[2]
    THc = TH // 2
    Wc = W // 2

    x = x_ref[0].reshape(TH * W, Cin).astype(w_ref.dtype)
    lat = jnp.dot(x, w_ref[...], preferred_element_type=jnp.float32) + b_ref[...]

    # nearest-2x upsample: half-size W interleave once, H duplication folded
    # into the add as a broadcast (no full-size `up` temporary).
    c = c_ref[0, :, PAD:PAD + Wc, :].astype(jnp.float32)                      # (THc, Wc, Cp)
    cw = jnp.broadcast_to(c[:, :, None, :], (THc, Wc, 2, Cp)).reshape(THc, W, Cp)
    out = lat.reshape(THc, 2, W, Cp) + cw[:, None, :, :]

    o_ref[0, :, PAD:PAD + W, :] = out.reshape(TH, W, Cp).astype(o_ref.dtype)
    o_ref[0, :, 0:PAD, :] = jnp.zeros((TH, PAD, Cp), o_ref.dtype)
    o_ref[0, :, PAD + W:Wp, :] = jnp.zeros((TH, Wp - PAD - W, Cp), o_ref.dtype)


def lateral_topdown_pad(x, w, b, coarse_pad, vmem_limit):
    # x: (N, H, W, Cin) ; coarse_pad: (N, H//2, Wcp, Cp) W-padded coarse fpn map
    N, H, W, Cin = x.shape
    Cp = w.shape[1]
    Nc, Hc, Wcp, Cc = coarse_pad.shape
    Wc = W // 2
    # TODO(synk): only exact factor-2 nearest upsampling (standard FPN pyramid) is
    # supported; arbitrary-size F.interpolate(..., mode='nearest') is not.
    assert Nc == N and Cc == Cp and H == 2 * Hc and W == 2 * Wc and Wcp >= PAD + Wc + 1, \
        "only exact factor-2 pyramids are supported"
    Wp = _round_up(PAD + W + 1, 8)
    fb = jnp.dtype(FPN_DTYPE).itemsize
    per_row = 2 * W * Cin * x.dtype.itemsize + 2 * Wp * Cp * fb + Wcp * Cp * fb
    const = 2 * (Cin * Cp * 2 + Cp * 4)
    TH = _pick_tile_h(H, per_row, const, vmem_limit, N, even=True)
    nT = H // TH
    THc = TH // 2
    return pl.pallas_call(
        _lateral_topdown_pad_kernel,
        out_shape=jax.ShapeDtypeStruct((N, H, Wp, Cp), FPN_DTYPE),
        grid_spec=pltpu.PrefetchScalarGridSpec(
            num_scalar_prefetch=0,
            grid=(N, nT),
            in_specs=[
                pl.BlockSpec((1, TH, W, Cin), lambda n, i: (n, i, 0, 0)),
                pl.BlockSpec((Cin, Cp), lambda n, i: (0, 0)),
                pl.BlockSpec((1, Cp), lambda n, i: (0, 0)),
                pl.BlockSpec((1, THc, Wcp, Cp), lambda n, i: (n, i, 0, 0)),
            ],
            out_specs=pl.BlockSpec((1, TH, Wp, Cp), lambda n, i: (n, i, 0, 0)),
        ),
        compiler_params=_compiler_params(vmem_limit),
    )(x, w, b, coarse_pad)


# ----------------------------------------------------------------------------
# K2: 3x3 smooth conv over the W-padded bf16 fpn map, H-tiled with 1-row halos
# ----------------------------------------------------------------------------
def _smooth3x3_kernel(top_ref, cur_ref, bot_ref, w_ref, b_ref, o_ref, acc_ref):
    # top/bot: (1, 1, Wp, C) FPN_DTYPE halo rows (clamped index maps)
    # cur: (1, TH, Wp, C) FPN_DTYPE   w: (9, C, Cp)   b: (1, Cp) f32
    # o: (1, TH, W, Cp) f32           acc: VMEM scratch (TH, W, Cp) f32
    i = pl.program_id(1)
    last = pl.num_programs(1) - 1
    _, TH, Wp, C = cur_ref.shape
    W = o_ref.shape[2]
    Cp = w_ref.shape[2]

    # accumulator initialized with the bias
    acc_ref[...] = jnp.broadcast_to(b_ref[...].reshape(1, 1, Cp), (TH, W, Cp))

    # interior contributions, taken directly from the bf16 blocks (no re-assembly)
    for dx in range(3):
        col0 = PAD - 1 + dx
        # dy = 1 (center row of the 3x3 window): all output rows from cur
        p = cur_ref[0, :, col0:col0 + W, :].reshape(TH * W, C)
        acc_ref[...] += jnp.dot(p, w_ref[3 + dx],
                                preferred_element_type=jnp.float32).reshape(TH, W, Cp)
        if TH > 1:
            # dy = 0: output rows 1..TH-1 use cur rows 0..TH-2
            p = cur_ref[0, 0:TH - 1, col0:col0 + W, :].reshape((TH - 1) * W, C)
            acc_ref[1:TH] += jnp.dot(p, w_ref[dx],
                                     preferred_element_type=jnp.float32).reshape(TH - 1, W, Cp)
            # dy = 2: output rows 0..TH-2 use cur rows 1..TH-1
            p = cur_ref[0, 1:TH, col0:col0 + W, :].reshape((TH - 1) * W, C)
            acc_ref[0:TH - 1] += jnp.dot(p, w_ref[6 + dx],
                                         preferred_element_type=jnp.float32).reshape(TH - 1, W, Cp)

    # halo contributions: skipped at the image borders (global rows -1 / H are zero pad)
    @pl.when(i > 0)
    def _():
        for dx in range(3):
            col0 = PAD - 1 + dx
            p = top_ref[0, 0, col0:col0 + W, :].reshape(W, C)
            acc_ref[0:1] += jnp.dot(p, w_ref[dx],
                                    preferred_element_type=jnp.float32).reshape(1, W, Cp)

    @pl.when(i < last)
    def _():
        for dx in range(3):
            col0 = PAD - 1 + dx
            p = bot_ref[0, 0, col0:col0 + W, :].reshape(W, C)
            acc_ref[TH - 1:TH] += jnp.dot(p, w_ref[6 + dx],
                                          preferred_element_type=jnp.float32).reshape(1, W, Cp)

    o_ref[0] = acc_ref[...].astype(o_ref.dtype)


def smooth3x3(fpn_pad, w9, b, W, vmem_limit):
    # fpn_pad: (N, H, Wp, C) W-padded bf16 fpn map ; w9: (9, C, Cp) ; b: (1, Cp)
    N, H, Wp, C = fpn_pad.shape
    Cp = w9.shape[2]
    fb = jnp.dtype(FPN_DTYPE).itemsize
    per_row = 2 * Wp * C * fb + 2 * W * Cp * 4 + W * Cp * 4
    const = 2 * (9 * C * Cp * 2 + Cp * 4 + 2 * Wp * C * fb)
    TH = _pick_tile_h(H, per_row, const, vmem_limit, N)
    nT = H // TH

    top_map = lambda n, i: (n, jnp.maximum(i * TH - 1, 0), 0, 0)
    bot_map = lambda n, i: (n, jnp.minimum(i * TH + TH, H - 1), 0, 0)

    return pl.pallas_call(
        _smooth3x3_kernel,
        out_shape=jax.ShapeDtypeStruct((N, H, W, Cp), jnp.float32),
        grid_spec=pltpu.PrefetchScalarGridSpec(
            num_scalar_prefetch=0,
            grid=(N, nT),
            in_specs=[
                pl.BlockSpec((1, 1, Wp, C), top_map),
                pl.BlockSpec((1, TH, Wp, C), lambda n, i: (n, i, 0, 0)),
                pl.BlockSpec((1, 1, Wp, C), bot_map),
                pl.BlockSpec((9, C, Cp), lambda n, i: (0, 0, 0)),
                pl.BlockSpec((1, Cp), lambda n, i: (0, 0)),
            ],
            out_specs=pl.BlockSpec((1, TH, W, Cp), lambda n, i: (n, i, 0, 0)),
            scratch_shapes=[pltpu.VMEM((TH, W, Cp), jnp.float32)],
        ),
        compiler_params=_compiler_params(vmem_limit),
    )(fpn_pad, fpn_pad, fpn_pad, w9, b)


# ----------------------------------------------------------------------------
# Parameter init (deterministic, PyTorch Conv2d-style uniform fan-in bound)
# ----------------------------------------------------------------------------
def init_fpn_params(key, in_channels_list, out_channels, dtype=jnp.float32):
    params = {"lateral": [], "smooth": []}
    for cin in in_channels_list:
        key, k1, k2 = jax.random.split(key, 3)
        bound = 1.0 / (cin ** 0.5)
        w = jax.random.uniform(k1, (out_channels, cin, 1, 1), dtype, -bound, bound)
        b = jax.random.uniform(k2, (out_channels,), dtype, -bound, bound)
        params["lateral"].append((w, b))
    for _ in in_channels_list:
        key, k1, k2 = jax.random.split(key, 3)
        bound = 1.0 / ((out_channels * 9) ** 0.5)
        w = jax.random.uniform(k1, (out_channels, out_channels, 3, 3), dtype, -bound, bound)
        b = jax.random.uniform(k2, (out_channels,), dtype, -bound, bound)
        params["smooth"].append((w, b))
    return params


# ----------------------------------------------------------------------------
# FPN forward (matches the PyTorch module semantics; NCHW in / NCHW out)
# ----------------------------------------------------------------------------
def fpn_forward(features_nchw, params):
    feats = [jnp.transpose(f, (0, 2, 3, 1)) for f in features_nchw]  # -> NHWC
    n = len(feats)
    vmem_limit = _vmem_limit_bytes()

    cout = params["lateral"][0][0].shape[0]
    Cp = _round_up(cout, 128)  # lane-pad channels; padded lanes carry exact zeros

    lat_w, lat_b, sm_w, sm_b = [], [], [], []
    for (w, b) in params["lateral"]:
        wl = jnp.transpose(w[:, :, 0, 0], (1, 0))                      # (Cin, Cout)
        lat_w.append(jnp.pad(wl, ((0, 0), (0, Cp - cout))).astype(MXU_DTYPE))
        lat_b.append(jnp.pad(b, (0, Cp - cout)).astype(jnp.float32).reshape(1, Cp))
    for (w, b) in params["smooth"]:
        ws = jnp.transpose(w, (2, 3, 1, 0)).reshape(9, cout, cout)     # (9, Cin, Cout)
        sm_w.append(jnp.pad(ws, ((0, 0), (0, Cp - cout), (0, Cp - cout))).astype(MXU_DTYPE))
        sm_b.append(jnp.pad(b, (0, Cp - cout)).astype(jnp.float32).reshape(1, Cp))

    # top-down pathway: each kernel writes the W-padded bf16 fpn map of its level
    fpn_pad = [None] * n
    fpn_pad[n - 1] = lateral_pad(feats[n - 1], lat_w[n - 1], lat_b[n - 1], vmem_limit)
    for i in range(n - 2, -1, -1):
        fpn_pad[i] = lateral_topdown_pad(feats[i], lat_w[i], lat_b[i], fpn_pad[i + 1], vmem_limit)

    # 3x3 smooth convs
    # TODO(synk): fuse the 3x3 smooth into the lateral/top-down kernel per level to
    # save one HBM round trip of each fpn map.
    outs = []
    for i in range(n):
        W = feats[i].shape[2]
        o = smooth3x3(fpn_pad[i], sm_w[i], sm_b[i], W, vmem_limit)
        outs.append(o[..., :cout])                                      # drop lane padding
    return [jnp.transpose(o, (0, 3, 1, 2)) for o in outs]               # -> NCHW


# ----------------------------------------------------------------------------
# Pure-JAX reference (f32 convs) for a tolerance check
# ----------------------------------------------------------------------------
def fpn_reference(features, params):
    hi = jax.lax.Precision.HIGHEST
    dn = ("NCHW", "OIHW", "NCHW")

    def conv(x, w, b, pad):
        y = jax.lax.conv_general_dilated(x, w, (1, 1), pad, dimension_numbers=dn, precision=hi)
        return y + b[None, :, None, None]

    lat = [conv(f, w, b, "VALID") for f, (w, b) in zip(features, params["lateral"])]
    fpn = [None] * len(lat)
    fpn[-1] = lat[-1]
    for i in range(len(lat) - 2, -1, -1):
        up = jnp.repeat(jnp.repeat(fpn[i + 1], 2, axis=2), 2, axis=3)
        fpn[i] = lat[i] + up
    return [conv(f, w, b, ((1, 1), (1, 1))) for f, (w, b) in zip(fpn, params["smooth"])]


if __name__ == "__main__":
    key = jax.random.PRNGKey(0)
    in_channels_list = [8, 16, 32, 64]
    out_channels = 32
    N = 2
    sizes = [16, 8, 4, 2]  # pyramid spatial sizes (exact factor-2 between levels)

    key_feats, key_params = jax.random.split(key)
    features = []
    kf = key_feats
    for cin, s in zip(in_channels_list, sizes):
        kf, kk = jax.random.split(kf)
        features.append(jax.random.normal(kk, (N, cin, s, s), jnp.float32))

    params = init_fpn_params(key_params, in_channels_list, out_channels)

    outs = fpn_forward(features, params)
    for o in outs:
        jax.block_until_ready(o)

    expected = [(N, out_channels, s, s) for s in sizes]
    assert [tuple(o.shape) for o in outs] == expected, [o.shape for o in outs]

    refs = fpn_reference(features, params)
    for o, r in zip(outs, refs):
        err = float(jnp.max(jnp.abs(o - r)))
        assert jnp.allclose(o, r, atol=1e-1, rtol=1e-1), err

    print("KERNEL_OK")
</pallas_src>

<mosaic_0001>
module attributes {stable_mosaic.version = 11 : i64} {
  func.func @_lateral_pad_kernel(%arg0: i32, %arg1: i32, %arg2: memref<1x2x2x64xf32, #tpu.memory_space<vmem>>, %arg3: memref<64x128xbf16, #tpu.memory_space<vmem>>, %arg4: memref<1x128xf32, #tpu.memory_space<vmem>>, %arg5: memref<1x2x16x128xbf16, #tpu.memory_space<vmem>>) attributes {dimension_semantics = [#tpu.dimension_semantics<parallel>, #tpu.dimension_semantics<parallel>], iteration_bounds = array<i64: 2, 1>, scalar_prefetch = 0 : i64, scratch_operands = 0 : i64, tpu.core_type = #tpu.core_type<tc>, window_params = [{transform_indices = @transform_0, window_bounds = array<i64: 1, 2, 2, 64>}, {pipeline_mode = #tpu.pipeline_mode<synchronous>, transform_indices = @transform_1, window_bounds = array<i64: 64, 128>}, {pipeline_mode = #tpu.pipeline_mode<synchronous>, transform_indices = @transform_2, window_bounds = array<i64: 1, 128>}, {transform_indices = @transform_3, window_bounds = array<i64: 1, 2, 16, 128>}]} {
    %c0 = arith.constant 0 : index
    %c0_0 = arith.constant 0 : index
    %c0_1 = arith.constant 0 : index
    %c0_2 = arith.constant 0 : index
    %0 = vector.load %arg2[%c0, %c0_0, %c0_1, %c0_2] : memref<1x2x2x64xf32, #tpu.memory_space<vmem>>, vector<1x2x2x64xf32>
    %1 = vector.shape_cast %0 : vector<1x2x2x64xf32> to vector<2x2x64xf32>
    %2 = vector.shape_cast %1 : vector<2x2x64xf32> to vector<4x64xf32>
    %3 = arith.truncf %2 : vector<4x64xf32> to vector<4x64xbf16>
    %c0_3 = arith.constant 0 : index
    %c0_4 = arith.constant 0 : index
    %4 = vector.load %arg3[%c0_3, %c0_4] : memref<64x128xbf16, #tpu.memory_space<vmem>>, vector<64x128xbf16>
    %cst = arith.constant dense<0.000000e+00> : vector<4x128xf32>
    %5 = tpu.matmul %3, %4, %cst {dimension_numbers = #tpu.dot_dimension_numbers<[1], [0], [0], [1], [0, 0, 1, 1], [], []>} : vector<4x64xbf16>, vector<64x128xbf16>, vector<4x128xf32> -> vector<4x128xf32>
    %c0_5 = arith.constant 0 : index
    %c0_6 = arith.constant 0 : index
    %6 = vector.load %arg4[%c0_5, %c0_6] : memref<1x128xf32, #tpu.memory_space<vmem>>, vector<1x128xf32>
    %7 = vector.broadcast %6 : vector<1x128xf32> to vector<4x128xf32>
    %8 = arith.addf %5, %7 : vector<4x128xf32>
    %9 = vector.shape_cast %8 : vector<4x128xf32> to vector<2x2x128xf32>
    %10 = arith.truncf %9 : vector<2x2x128xf32> to vector<2x2x128xbf16>
    %c0_7 = arith.constant 0 : index
    %c0_8 = arith.constant 0 : index
    %c8 = arith.constant 8 : index
    %c0_9 = arith.constant 0 : index
    %11 = vector.load %arg5[%c0_7, %c0_8, %c8, %c0_9] : memref<1x2x16x128xbf16, #tpu.memory_space<vmem>>, vector<1x2x2x128xbf16>
    %12 = vector.shape_cast %11 : vector<1x2x2x128xbf16> to vector<2x2x128xbf16>
    %13 = vector.shape_cast %10 : vector<2x2x128xbf16> to vector<1x2x2x128xbf16>
    tpu.vector_store %arg5[%c0_7, %c0_8, %c8, %c0_9], %13 {strides = array<i32>} : memref<1x2x16x128xbf16, #tpu.memory_space<vmem>>, vector<1x2x2x128xbf16>,
    %cst_10 = arith.constant 0.000000e+00 : bf16
    %14 = vector.broadcast %cst_10 : bf16 to vector<2x8x128xbf16>
    %c0_11 = arith.constant 0 : index
    %c0_12 = arith.constant 0 : index
    %c0_13 = arith.constant 0 : index
    %c0_14 = arith.constant 0 : index
    %15 = vector.load %arg5[%c0_11, %c0_12, %c0_13, %c0_14] : memref<1x2x16x128xbf16, #tpu.memory_space<vmem>>, vector<1x2x8x128xbf16>
    %16 = vector.shape_cast %15 : vector<1x2x8x128xbf16> to vector<2x8x128xbf16>
    %17 = vector.shape_cast %14 : vector<2x8x128xbf16> to vector<1x2x8x128xbf16>
    tpu.vector_store %arg5[%c0_11, %c0_12, %c0_13, %c0_14], %17 {strides = array<i32>} : memref<1x2x16x128xbf16, #tpu.memory_space<vmem>>, vector<1x2x8x128xbf16>,
    %cst_15 = arith.constant 0.000000e+00 : bf16
    %18 = vector.broadcast %cst_15 : bf16 to vector<2x6x128xbf16>
    %c0_16 = arith.constant 0 : index
    %c0_17 = arith.constant 0 : index
    %c10 = arith.constant 10 : index
    %c0_18 = arith.constant 0 : index
    %19 = vector.load %arg5[%c0_16, %c0_17, %c10, %c0_18] : memref<1x2x16x128xbf16, #tpu.memory_space<vmem>>, vector<1x2x6x128xbf16>
    %20 = vector.shape_cast %19 : vector<1x2x6x128xbf16> to vector<2x6x128xbf16>
    %21 = vector.shape_cast %18 : vector<2x6x128xbf16> to vector<1x2x6x128xbf16>
    tpu.vector_store %arg5[%c0_16, %c0_17, %c10, %c0_18], %21 {strides = array<i32>} : memref<1x2x16x128xbf16, #tpu.memory_space<vmem>>, vector<1x2x6x128xbf16>,
    return
  }
  func.func @transform_0(%arg0: i32, %arg1: i32) -> (i32, i32, i32, i32) {
    %c0_i32 = arith.constant 0 : i32
    %c0_i32_0 = arith.constant 0 : i32
    %c0_i32_1 = arith.constant 0 : i32
    return %arg0, %arg1, %c0_i32, %c0_i32_0 : i32, i32, i32, i32
  }
  func.func @transform_1(%arg0: i32, %arg1: i32) -> (i32, i32) {
    %c0_i32 = arith.constant 0 : i32
    %c0_i32_0 = arith.constant 0 : i32
    %c0_i32_1 = arith.constant 0 : i32
    return %c0_i32, %c0_i32_0 : i32, i32
  }
  func.func @transform_2(%arg0: i32, %arg1: i32) -> (i32, i32) {
    %c0_i32 = arith.constant 0 : i32
    %c0_i32_0 = arith.constant 0 : i32
    %c0_i32_1 = arith.constant 0 : i32
    return %c0_i32, %c0_i32_0 : i32, i32
  }
  func.func @transform_3(%arg0: i32, %arg1: i32) -> (i32, i32, i32, i32) {
    %c0_i32 = arith.constant 0 : i32
    %c0_i32_0 = arith.constant 0 : i32
    %c0_i32_1 = arith.constant 0 : i32
    return %arg0, %arg1, %c0_i32, %c0_i32_0 : i32, i32, i32, i32
  }
}

</mosaic_0001>

<llo_original>
// kernel: tpu_custom_call.1
$region0: #{tpu_custom_call.1}
  #allocation0 [shape = 'u32[]', space=smem, size = 0x4, offset = 0x4, fixed_abs, tag = 'smem constant byte address 0x4 - core index']
  #allocation1 [shape = 'u32[144,128]{1,0:T(1,128)}', space=vmem, size = 0x12000, scoped, tag = 'internal scratch']
  %s0 = inlined_call_operand.hbm [shape: f32[2,2,2,64], index: 0, kind: input, shape index: {}]
  %s1 = inlined_call_operand.hbm [shape: bf16[64,128], index: 1, kind: input, shape index: {}]
  %s2 = inlined_call_operand.vmem [shape: f32[1,128], index: 2, kind: input, shape index: {}]
  %s3 = inlined_call_operand.hbm [shape: bf16[2,2,16,128], index: 3, kind: output, shape index: {}]
  %s4 = sld [smem:[#allocation0]]
  $region53: #{tpu_custom_call.1} parent=0
    _
  %s6 = ssub.s32 1, %s4
  %s7 = scalar_select 0, %s6, %s4
  $region1: #{tpu_custom_call.1} parent=0
    #allocation2 [shape = 'u8[4096]{0}', space=vmem, size = 0x1000, scoped, tag = 'input window, operand 0']
    #allocation3 [shape = 's32[2]{0}', space=sflag, size = 0x8, scoped, tag = 'scoped memory for tpu_custom_call.1']
    #allocation4 [shape = 's32[2]{0}', space=sflag, size = 0x8, scoped, tag = 'scoped memory for tpu_custom_call.1']
    #allocation5 [shape = 'u8[16384]{0}', space=vmem, size = 0x4000, scoped, tag = 'input window, operand 1, single buffered']
    #allocation6 [shape = 's32[1]{0}', space=sflag, size = 0x4, scoped, tag = 'scoped memory for tpu_custom_call.1']
    #allocation7 [shape = 'u8[16384]{0}', space=vmem, size = 0x4000, scoped, tag = 'output window, operand 0']
    %8 = vsyncpa [#allocation3], 0
    %s9 = scalar_lea.sflag [#allocation3], 1
    %10 = vsyncpa %s9, 0
    %11 = vsyncpa [#allocation6], 0
    %12 = vsyncpa [#allocation4], 0
    %s13 = scalar_lea.sflag [#allocation4], 1
    %14 = vsyncpa %s13, 0
    loop: start=0, step=1, limit=4
    $region2: #{tpu_custom_call.1} parent=1 // loop_pre_header
      _
    $region3: #{tpu_custom_call.1} parent=1 // loop_header
      %s16 = sphi 0, %s20
      %p17 = scmp.ge.s32.totalorder %s16, 4
      %s23 = sphi 0, %s35
      %s24 = sphi 0, %s31
      %s25 = sphi 0, %s23
      %s26 = sphi 0, %s24
      %s27 = sphi 0, %s25
      %s28 = sphi 0, %s26
      %s40 = sphi 0, %s42
      %s43 = sphi 0, %s40
      %s44 = sphi 0, %s43
      %s60 = sphi 0, %s44
      %s64 = sphi 0, %s64
      %s66 = sphi 0, %s64
      %s67 = sphi 0, %s66
      %s81 = sphi 0, %s67
      %s85 = sphi 0, %s85
      %s87 = sphi 0, %s85
      %s88 = sphi 0, %s87
      %s102 = sphi 0, %s88
      %s110 = sphi 0, %s112
      %s113 = sphi 0, %s110
      %s114 = sphi 0, %s113
      %s130 = sphi 0, %s114
    $region4: #{tpu_custom_call.1} parent=1 // loop_header_branch
      %19 = sbr.rel (%p17) target = $region8
    $region5: #{tpu_custom_call.1} parent=1 // loop_body
      %s21 = ssub.s32 %s16, 1
      %s22 = ssub.s32 %s16, 2
      %s29 = sadd.s32 1, %s24
      %p30 = scmp.ge.s32.totalorder %s29, 1
      %s31 = scalar_select %p30, 0, %s29
      %s32 = sadd.s32 1, %s23
      %s33 = scalar_select %p30, %s32, %s23
      %p34 = scmp.ge.s32.totalorder %s33, 2
      %s35 = scalar_select %p34, 0, %s33
      %s36 = ssub.s32 %s23, %s35
      %s37 = ssub.s32 %s24, %s31
      %s38 = sor.u32 %s36, %s37
      %p39 = scmp.eq.s32.totalorder %s38, 0
      %s41 = sadd.s32 %s40, 1
      %s42 = scalar_select %p39, %s40, %s41
      %p45 = pneg %p39
      %p46 = scmp.eq.s32.totalorder %s16, 1
      %p47 = por %p45, %p46
      %p48 = scmp.ne.s32.totalorder %s40, %s43
      %p49 = scmp.eq.s32.totalorder %s16, 0
      %p50 = por %p48, %p49
      %p51 = scmp.ne.s32.totalorder %s40, %s43
      %p52 = scmp.eq.s32.totalorder %s21, 1
      %p53 = por %p51, %p52
      %p54 = scmp.ne.s32.totalorder %s43, %s44
      %p55 = scmp.eq.s32.totalorder %s21, 0
      %p56 = por %p54, %p55
      %p57 = scmp.ne.s32.totalorder %s43, %s44
      %p58 = scmp.eq.s32.totalorder %s22, 1
      %p59 = por %p57, %p58
      %p61 = scmp.ne.s32.totalorder %s44, %s60
      %p62 = scmp.eq.s32.totalorder %s22, 0
      %p63 = por %p61, %p62
      %s65 = sadd.s32 %s64, 1
      %p68 = scmp.eq.s32.totalorder %s16, 1
      %p69 = scmp.ne.s32.totalorder %s64, %s66
      %p70 = scmp.eq.s32.totalorder %s16, 0
      %p71 = por %p69, %p70
      %p72 = scmp.ne.s32.totalorder %s64, %s66
      %p73 = scmp.eq.s32.totalorder %s21, 1
      %p74 = por %p72, %p73
      %p75 = scmp.ne.s32.totalorder %s66, %s67
      %p76 = scmp.eq.s32.totalorder %s21, 0
      %p77 = por %p75, %p76
      %p78 = scmp.ne.s32.totalorder %s66, %s67
      %p79 = scmp.eq.s32.totalorder %s22, 1
      %p80 = por %p78, %p79
      %p82 = scmp.ne.s32.totalorder %s67, %s81
      %p83 = scmp.eq.s32.totalorder %s22, 0
      %p84 = por %p82, %p83
      %s86 = sadd.s32 %s85, 1
      %p89 = scmp.eq.s32.totalorder %s16, 1
      %p90 = scmp.ne.s32.totalorder %s85, %s87
      %p91 = scmp.eq.s32.totalorder %s16, 0
      %p92 = por %p90, %p91
      %p93 = scmp.ne.s32.totalorder %s85, %s87
      %p94 = scmp.eq.s32.totalorder %s21, 1
      %p95 = por %p93, %p94
      %p96 = scmp.ne.s32.totalorder %s87, %s88
      %p97 = scmp.eq.s32.totalorder %s21, 0
      %p98 = por %p96, %p97
      %p99 = scmp.ne.s32.totalorder %s87, %s88
      %p100 = scmp.eq.s32.totalorder %s22, 1
      %p101 = por %p99, %p100
      %p103 = scmp.ne.s32.totalorder %s88, %s102
      %p104 = scmp.eq.s32.totalorder %s22, 0
      %p105 = por %p103, %p104
      %s106 = ssub.s32 %s23, %s35
      %s107 = ssub.s32 %s24, %s31
      %s108 = sor.u32 %s106, %s107
      %p109 = scmp.eq.s32.totalorder %s108, 0
      %s111 = sadd.s32 %s110, 1
      %s112 = scalar_select %p109, %s110, %s111
      %p115 = pneg %p109
      %p116 = scmp.eq.s32.totalorder %s16, 1
      %p117 = por %p115, %p116
      %p118 = scmp.ne.s32.totalorder %s110, %s113
      %p119 = scmp.eq.s32.totalorder %s16, 0
      %p120 = por %p118, %p119
      %p121 = scmp.ne.s32.totalorder %s110, %s113
      %p122 = scmp.eq.s32.totalorder %s21, 1
      %p123 = por %p121, %p122
      %p124 = scmp.ne.s32.totalorder %s113, %s114
      %p125 = scmp.eq.s32.totalorder %s21, 0
      %p126 = por %p124, %p125
      %p127 = scmp.ne.s32.totalorder %s113, %s114
      %p128 = scmp.eq.s32.totalorder %s22, 1
      %p129 = por %p127, %p128
      %p131 = scmp.ne.s32.totalorder %s114, %s130
      %p132 = scmp.eq.s32.totalorder %s22, 0
      %p133 = por %p131, %p132
      %p134 = scmp.le.s32.totalorder 1, %s16
      %p135 = scmp.lt.s32.totalorder %s16, 3
      %p136 = pnand %p134, %p135
      %p137 = pneg %p136
      // Predicated region
      $region9: #{tpu_custom_call.1} parent=5 // pred_check
        _
      $region10: #{tpu_custom_call.1} parent=5 // pred_check_branch
        %139 = sbr.rel (%p136) target = $region12
      $region11: #{tpu_custom_call.1} parent=5 // pred_region
        %s140 = ssub.s32 %s16, 1
        // Predicated region
        $region13: #{tpu_custom_call.1} parent=11 // pred_check
          %p141 = pneg %p77
        $region14: #{tpu_custom_call.1} parent=11 // pred_check_branch
          %143 = sbr.rel (%p141) target = $region16
        $region15: #{tpu_custom_call.1} parent=11 // pred_region
          %s145 = ssub.s32 512, 512
          %146 = vsyncadd [#allocation6], %s145
          %s147 = sshll.u32 [#allocation5], 4
          %s148 = int_to_ptr.vmem [resolvable:$true] %s147
          %153 = dma.hbm_to_vmem [thread:$0]  %s1, 512, %s148, [#allocation6], 64, 64, 4
        $region16: #{tpu_custom_call.1} parent=11 // pred_fallthru
          _
        // Predicated region
        $region17: #{tpu_custom_call.1} parent=11 // pred_check
          %p154 = pneg %p98
        $region18: #{tpu_custom_call.1} parent=11 // pred_check_branch
          %156 = sbr.rel (%p154) target = $region20
        $region19: #{tpu_custom_call.1} parent=11 // pred_region
          _
        $region20: #{tpu_custom_call.1} parent=11 // pred_fallthru
          _
      $region12: #{tpu_custom_call.1} parent=5 // pred_fallthru
        _
      %p157 = scmp.lt.s32.totalorder %s16, 2
      // Predicated region
      $region21: #{tpu_custom_call.1} parent=5 // pred_check
        %p158 = pneg %p157
      $region22: #{tpu_custom_call.1} parent=5 // pred_check_branch
        %160 = sbr.rel (%p158) target = $region24
      $region23: #{tpu_custom_call.1} parent=5 // pred_region
        // Predicated region
        $region25: #{tpu_custom_call.1} parent=23 // pred_check
          %p161 = pneg %p50
        $region26: #{tpu_custom_call.1} parent=23 // pred_check_branch
          %163 = sbr.rel (%p161) target = $region28
        $region27: #{tpu_custom_call.1} parent=23 // pred_region
          %s164 = sand.u32 %s40, 1
          %s165 = scalar_lea.sflag [#allocation3], %s164
          %s166 = sand.u32 %s40, 1
          %s167 = smul.addr %s166, 4
          %s168 = scalar_lea.vmem [#allocation2], %s167
          %s169 = smul.u32 2, %s24
          %s171 = ssub.s32 64, 64
          %172 = vsyncadd %s165, %s171
          %s173 = smul.addr %s23, 2
          %s174 = sadd.s32 %s169, %s173
          %s175 = smul.addr %s174, 32
          %s176 = scalar_lea.hbm %s0, %s175
          %s177 = sshll.u32 %s168, 4
          %s178 = int_to_ptr.vmem [resolvable:$true] %s177
          %183 = dma.hbm_to_vmem [thread:$0]  %s176, 64, %s178, %s165, 32, 32, 2
        $region28: #{tpu_custom_call.1} parent=23 // pred_fallthru
          _
      $region24: #{tpu_custom_call.1} parent=5 // pred_fallthru
        _
      %p184 = scmp.le.s32.totalorder 1, %s16
      %p185 = scmp.lt.s32.totalorder %s16, 3
      %p186 = pnand %p184, %p185
      %p187 = pneg %p186
      // Predicated region
      $region29: #{tpu_custom_call.1} parent=5 // pred_check
        _
      $region30: #{tpu_custom_call.1} parent=5 // pred_check_branch
        %189 = sbr.rel (%p186) target = $region32
      $region31: #{tpu_custom_call.1} parent=5 // pred_region
        %s190 = ssub.s32 %s16, 1
        %s191 = sand.u32 %s43, 1
        %s192 = scalar_lea.sflag [#allocation3], %s191
        %s193 = sand.u32 %s43, 1
        %s194 = smul.addr %s193, 4
        %s195 = scalar_lea.vmem [#allocation2], %s194
        // Predicated region
        $region33: #{tpu_custom_call.1} parent=31 // pred_check
          %p196 = pneg %p56
        $region34: #{tpu_custom_call.1} parent=31 // pred_check_branch
          %198 = sbr.rel (%p196) target = $region36
        $region35: #{tpu_custom_call.1} parent=31 // pred_region
          %199 = dma.done %s192, 64
        $region36: #{tpu_custom_call.1} parent=31 // pred_fallthru
          _
        // Predicated region
        $region37: #{tpu_custom_call.1} parent=31 // pred_check
          %p200 = pneg %p77
        $region38: #{tpu_custom_call.1} parent=31 // pred_check_branch
          %202 = sbr.rel (%p200) target = $region40
        $region39: #{tpu_custom_call.1} parent=31 // pred_region
          %203 = dma.done [#allocation6], 512
        $region40: #{tpu_custom_call.1} parent=31 // pred_fallthru
          _
        %s204 = sand.u32 %s43, 1
        %s205 = scalar_lea.sflag [#allocation3], %s204
        %s206 = sand.u32 %s43, 1
        %s207 = smul.addr %s206, 4
        %s208 = scalar_lea.vmem [#allocation2], %s207
        %p209 = pneg %p56
        %p210 = pneg %p53
        %p211 = pneg %p77
        %p212 = pneg %p74
        %p213 = pneg %p98
        %p214 = pneg %p95
        %p215 = pneg %p126
        %p216 = pneg %p123
        %s217 = sand.u32 %s113, 1
        %s218 = scalar_lea.sflag [#allocation4], %s217
        %s219 = sand.u32 %s113, 1
        %s220 = smul.addr %s219, 16
        %s221 = scalar_lea.vmem [#allocation7], %s220
        %s222 = smul.u32 2, %s26
        %s223 = smul.u32 2, %s26
        %v225 = vld [vmem:[%s195] sm:$0x3]
        %v226 = vld [vmem:[%s195 + $0x2] sm:$0x3]
        %v229 = vcombine.low %v225, %v226
        %v231 = vunpack.c.l.s4 1983009808
        %v232 = vunpack.c.0.s8 %v231
        %v233 = vlaneseq
        %v234 = vshrl.u32 %v233, 7
        %v235 = vsub.s32 %v232, %v234
        %v236 = vrot.slane %v229, %v235
        %v238 = vpack.c.bf16 %v236, %v236
        %v239 = vld [vmem:[#allocation5] sm:$0xf]
        %v240 = vld [vmem:[#allocation5 + $0x4] sm:$0xf]
        %v241 = vld [vmem:[#allocation5 + $0x8] sm:$0xf]
        %v242 = vld [vmem:[#allocation5 + $0xc] sm:$0xf]
        %v243 = vld [vmem:[#allocation5 + $0x10] sm:$0xf]
        %v244 = vld [vmem:[#allocation5 + $0x14] sm:$0xf]
        %v245 = vld [vmem:[#allocation5 + $0x18] sm:$0xf]
        %v246 = vld [vmem:[#allocation5 + $0x1c] sm:$0xf]
        %v247 = vld [vmem:[%s2] sm:$0x1]
        %v249 = vlaneseq
        %v250 = vshrl.u32 %v249, 7
        %v251 = vsub.s32 0, %v250
        %v252 = vrot.slane %v247, %v251
        %v262 = vunpack.c.l.b16 %v239
        %v263 = vunpack.c.l.b16 %v240
        %v264 = vunpack.c.l.b16 %v241
        %v265 = vunpack.c.l.b16 %v242
        %v266 = vunpack.c.l.b16 %v243
        %v267 = vunpack.c.l.b16 %v244
        %v268 = vunpack.c.l.b16 %v245
        %v269 = vunpack.c.l.b16 %v246
        %v270 = vpack.c.b16 %v263, %v262
        %v271 = vpack.c.b16 %v265, %v264
        %v272 = vpack.c.b16 %v267, %v266
        %v273 = vpack.c.b16 %v269, %v268
        %vm278 = vcmask 523264
        %v280 = vsel %vm278, %v238, 0
        %282 = vmatprep.subr.bf16.mxu0 0
        %283 = vmatpush1.bf16.msra.mxu0 0
        %284 = vmatprep.subr.bf16.mxu0 0
        %285 = vmatpush1.bf16.msra.mxu0 0
        %286 = vmatprep.subr.bf16.mxu0 0
        %287 = vmatpush1.bf16.msra.mxu0 0
        %288 = vmatprep.subr.bf16.mxu0 0
        %289 = vmatpush1.bf16.msra.mxu0 0
        %290 = vmatprep.subr.bf16.mxu0 0
        %291 = vmatpush1.bf16.msra.mxu0 %v273
        %292 = vmatprep.subr.bf16.mxu0 0
        %293 = vmatpush1.bf16.msra.mxu0 %v272
        %294 = vmatprep.subr.bf16.mxu0 0
        %295 = vmatpush1.bf16.msra.mxu0 %v271
        %296 = vmatprep.subr.bf16.mxu0 0
        %297 = vmatpush1.bf16.msra.mxu0 %v270
        %298 = vmatprep.subr.bf16.mxu0 0
        %299 = vmatpush2.bf16.msra.mxu0 0
        %300 = vmatprep.subr.bf16.mxu0 0
        %301 = vmatpush2.bf16.msra.mxu0 0
        %302 = vmatprep.subr.bf16.mxu0 0
        %303 = vmatpush2.bf16.msra.mxu0 0
        %304 = vmatprep.subr.bf16.mxu0 0
        %305 = vmatpush2.bf16.msra.mxu0 0
        %306 = vmatprep.subr.bf16.mxu0 0
        %307 = vmatpush2.bf16.msra.mxu0 0
        %308 = vmatprep.subr.bf16.mxu0 0
        %309 = vmatpush2.bf16.msra.mxu0 0
        %310 = vmatprep.subr.bf16.mxu0 0
        %311 = vmatpush2.bf16.msra.mxu0 0
        %312 = vmatprep.subr.bf16.mxu0 0
        %313 = vmatpush2.bf16.msra.mxu0 0
        %314 = vmatprep.mubr.bf16.mxu0 0
        %315 = vmatmul.mubr.bf16.gmra.mxu0 %v280
        %v316 = vpop.f32.mrf.mxu0
        %v317 = vadd.f32 %v252, %v316
        %v318 = vpop.f32.mrf.mxu0
        %v319 = vpop.f32.mrf.mxu0
        %v320 = vpop.f32.mrf.mxu0
        %321 = vdwg.mxu0
        %v324 = vunpack.c.l.s4 1983009808
        %v325 = vunpack.c.0.s8 %v324
        %v326 = vlaneseq
        %v327 = vshrl.u32 %v326, 7
        %v328 = vsub.s32 %v325, %v327
        %v329 = vrot.slane %v317, %v328
        %v330 = vcombine.high %v329, %v329
        %v333 = vpack.c.bf16 %v329, %v329
        %v334 = vpack.c.bf16 %v330, %v330
        %335 = vst [vmem:[%s221 + $0x4] sm:$0x1] %v333
        %336 = vst [vmem:[%s221 + $0xc] sm:$0x1] %v334
        %337 = vst [vmem:[%s221] sm:$0xf] 0
        %338 = vst [vmem:[%s221 + $0x8] sm:$0xf] 0
        %339 = vst [vmem:[%s221 + $0x4] sm:$0xe] 0
        %340 = vst [vmem:[%s221 + $0xc] sm:$0xe] 0
        %s341 = sand.u32 %s113, 1
        %s342 = scalar_lea.sflag [#allocation4], %s341
        %s343 = sand.u32 %s113, 1
        %s344 = smul.addr %s343, 16
        %s345 = scalar_lea.vmem [#allocation7], %s344
        // Predicated region
        $region41: #{tpu_custom_call.1} parent=31 // pred_check
          %p346 = pneg %p123
        $region42: #{tpu_custom_call.1} parent=31 // pred_check_branch
          %348 = sbr.rel (%p346) target = $region44
        $region43: #{tpu_custom_call.1} parent=31 // pred_region
          %s349 = smul.u32 2, %s26
          %s351 = ssub.s32 256, 256
          %352 = vsyncadd %s342, %s351
          %s353 = smul.addr %s349, 2
          %s354 = smul.addr %s25, 4
          %s355 = sadd.s32 %s353, %s354
          %s356 = smul.addr %s355, 64
          %s357 = scalar_lea.hbm %s3, %s356
          %s358 = sshll.u32 %s345, 4
          %s359 = int_to_ptr.vmem [resolvable:$true] %s358
          %364 = dma.vmem_to_hbm [thread:$0]  %s359, 256, %s357, %s342, 64, 64, 4
        $region44: #{tpu_custom_call.1} parent=31 // pred_fallthru
          _
      $region32: #{tpu_custom_call.1} parent=5 // pred_fallthru
        _
      %p365 = scmp.le.s32.totalorder 2, %s16
      // Predicated region
      $region45: #{tpu_custom_call.1} parent=5 // pred_check
        %p366 = pneg %p365
      $region46: #{tpu_custom_call.1} parent=5 // pred_check_branch
        %368 = sbr.rel (%p366) target = $region48
      $region47: #{tpu_custom_call.1} parent=5 // pred_region
        %s369 = ssub.s32 %s16, 2
        // Predicated region
        $region49: #{tpu_custom_call.1} parent=47 // pred_check
          %p370 = pneg %p129
        $region50: #{tpu_custom_call.1} parent=47 // pred_check_branch
          %372 = sbr.rel (%p370) target = $region52
        $region51: #{tpu_custom_call.1} parent=47 // pred_region
          %s373 = sand.u32 %s114, 1
          %s374 = scalar_lea.sflag [#allocation4], %s373
          %s375 = sand.u32 %s114, 1
          %s376 = smul.addr %s375, 16
          %s377 = scalar_lea.vmem [#allocation7], %s376
          %378 = dma.done %s374, 256
        $region52: #{tpu_custom_call.1} parent=47 // pred_fallthru
          _
      $region48: #{tpu_custom_call.1} parent=5 // pred_fallthru
        _
    $region6: #{tpu_custom_call.1} parent=1 // loop_footer
      %s20 = sadd.s32 1, %s16
    $region7: #{tpu_custom_call.1} parent=1 // loop_footer_branch
      %15 = sbr.rel target = $region3
    $region8: #{tpu_custom_call.1} parent=1 // loop_exit
      _
    %379 = vsyncpa [#allocation3], 1
    %s380 = scalar_lea.sflag [#allocation3], 1
    %381 = vsyncpa %s380, 1
    %382 = vsyncpa [#allocation6], 1
    %383 = vsyncpa [#allocation4], 1
    %s384 = scalar_lea.sflag [#allocation4], 1
    %385 = vsyncpa %s384, 1

</llo_original>
